<compile_context>
chip_gen: v6e
topology: v6e:2x2x1
jax: 0.10.0
libtpu: 0.0.40
codegen_flags: <defaults>
</compile_context>

<pallas_src>
import jax
import jax.numpy as jnp
from jax.experimental import pallas as pl
from jax.experimental.pallas import tpu as pltpu


def _projector_kernel(x_ref, w_ref, b_ref, o_ref):
    # x_ref: (TM, K)  w_ref: (K, N)  b_ref: (1, N) f32  o_ref: (TM, N)
    acc = jnp.dot(x_ref[...], w_ref[...], preferred_element_type=jnp.float32)
    o_ref[...] = (acc + b_ref[...]).astype(o_ref.dtype)


def prepare_projector_params(weight_nk, bias, *, param_dtype=jnp.bfloat16):
    """Convert nn.Linear params ([out, in] weight, [out] bias) to kernel layout.

    Call ONCE at model-load time: the weight is transposed to [K, N] and cast
    to `param_dtype` (bf16 by default so the MXU runs in fast bf16 mode with
    f32 accumulation), and the bias is pre-cast to f32 / pre-shaped (1, N) so
    no per-forward cast/reshape ops are issued.
    """
    w = jnp.asarray(weight_nk)           # [N, K] (nn.Linear layout)
    b = jnp.asarray(bias)                # [N]
    n, _ = w.shape
    weight_kn = w.T.astype(param_dtype)  # [K, N]
    bias_1n = b.astype(jnp.float32).reshape(1, n)
    return weight_kn, bias_1n


def _vmem_plan():
    """(vmem_limit_bytes, default TM cap) sized per chip generation."""
    try:
        cap = pltpu.get_tpu_info().vmem_capacity_bytes
    except Exception:
        cap = 128 * 1024 * 1024
    if cap <= 64 * 1024 * 1024:
        # v7x-class: 64 MiB per TensorCore -> tight budget, smaller tiles.
        limit, tm_cap = 40 * 1024 * 1024, 512
    else:
        # v5e / v6e: 128 MiB VMEM -> bigger tiles amortize per-step overhead.
        limit, tm_cap = 72 * 1024 * 1024, 1024
    return min(limit, int(cap * 0.6)), tm_cap


def _choose_tm(M, tm_max):
    """Pick the M tile.

    Small M: a single full-extent block (always legal).  Larger M: a multiple
    of 128 (MXU-friendly on v5e/v6e/v7x), capped so grid_m >= 2 so a 2-TC chip
    (v7x) shards the 'parallel' M axis across both TensorCores.
    """
    if M <= 256:
        if tm_max >= M:
            return M                         # single full-extent block
        return max(8, (tm_max // 8) * 8)     # sublane-aligned small tiles
    tm = min(tm_max, M)
    tm = max(128, (tm // 128) * 128)         # multiple of 128
    if pl.cdiv(M, tm) < 2:                   # ensure >= 2 grid steps
        tm = max(128, ((pl.cdiv(M, 2) + 127) // 128) * 128)
    return tm


def paligemma_multimodal_projector(image_features, weight_kn, bias_1n, *,
                                   tm_max=None, out_dtype=None):
    """image_features: [B, S, K]; weight_kn: [K, N] (pre-transposed, ideally
    bf16); bias_1n: [1, N] f32 (see prepare_projector_params)."""
    B, S, K = image_features.shape
    Kw, N = weight_kn.shape
    assert Kw == K, f"weight K dim {Kw} != feature dim {K}"
    assert bias_1n.shape == (1, N), f"bias shape {bias_1n.shape} != (1, {N})"
    M = B * S

    vmem_limit, tm_cap = _vmem_plan()
    if tm_max is None:
        tm_max = tm_cap
    TM = _choose_tm(M, tm_max)
    grid_m = pl.cdiv(M, TM)

    # Matmul operands must share a (preferably low-precision) dtype: cast x to
    # the weight dtype so the MXU avoids the slow mixed/f32 multi-pass mode.
    compute_dtype = weight_kn.dtype
    x2d = image_features.reshape(M, K)
    if x2d.dtype != compute_dtype:
        x2d = x2d.astype(compute_dtype)
    if out_dtype is None:
        out_dtype = image_features.dtype

    cost = pl.CostEstimate(
        flops=2 * M * K * N,
        transcendentals=0,
        bytes_accessed=(M * K * x2d.dtype.itemsize              # x (read)
                        + K * N * weight_kn.dtype.itemsize      # W (read once)
                        + N * 4                                 # bias (f32)
                        + M * N * jnp.dtype(out_dtype).itemsize))  # out

    def run(resident_buffer_count):
        def resident_spec(shape):
            if resident_buffer_count is None:
                return pl.BlockSpec(shape, lambda i: (0, 0))
            return pl.BlockSpec(shape, lambda i: (0, 0),
                                pipeline_mode=pl.Buffered(resident_buffer_count))

        grid_spec = pltpu.PrefetchScalarGridSpec(
            num_scalar_prefetch=0,
            grid=(grid_m,),
            in_specs=[
                pl.BlockSpec((TM, K), lambda i: (i, 0)),   # x tile, streamed
                resident_spec((K, N)),                     # weight, VMEM-resident
                resident_spec((1, N)),                     # bias, VMEM-resident
            ],
            out_specs=pl.BlockSpec((TM, N), lambda i: (i, 0)),
        )
        return pl.pallas_call(
            _projector_kernel,
            out_shape=jax.ShapeDtypeStruct((M, N), out_dtype),
            grid_spec=grid_spec,
            compiler_params=pltpu.CompilerParams(
                dimension_semantics=("parallel",),          # no reduction axis
                vmem_limit_bytes=vmem_limit),
            cost_estimate=cost,
        )(x2d, weight_kn, bias_1n)

    try:
        # Preferred: constant-index weight/bias single-buffered (reclaims the
        # default second weight buffer, ~4.7 MB bf16 at real PaliGemma size).
        out2d = run(1)
    except Exception:
        # Fallback for JAX builds that reject Buffered(1): default 2-buffering.
        out2d = run(None)

    return out2d.reshape(B, S, N)


if __name__ == "__main__":
    # Small synthetic config consistent with the module (lane-aligned dims):
    #   vision_config.hidden_size = 128, projection_dim = 256
    #   image_features: [batch=2, num_patches=16, hidden=128]
    batch, num_patches = 2, 16
    vision_hidden_size, projection_dim = 128, 256

    key = jax.random.PRNGKey(0)
    k_x, k_w, k_b = jax.random.split(key, 3)

    image_features = jax.random.normal(
        k_x, (batch, num_patches, vision_hidden_size), dtype=jnp.float32)
    # nn.Linear weight layout: [out_features, in_features]
    weight = jax.random.normal(
        k_w, (projection_dim, vision_hidden_size), dtype=jnp.float32) * 0.02
    bias = jax.random.normal(k_b, (projection_dim,), dtype=jnp.float32) * 0.02

    # Pure-JAX reference (nn.Linear semantics: x @ W.T + b).
    ref = image_features @ weight.T + bias

    # 1) Production path: bf16 weight (fast MXU mode), f32 accumulation.
    w_bf16, b_prep = prepare_projector_params(weight, bias)  # default bf16
    out = paligemma_multimodal_projector(image_features, w_bf16, b_prep)
    out = jax.block_until_ready(out)
    assert out.shape == (batch, num_patches, projection_dim)
    assert jnp.allclose(out, ref, atol=3e-2, rtol=3e-2), "bf16 path mismatch"

    # 2) f32 params path: tight-tolerance check of exact Linear semantics.
    w_f32, b_prep32 = prepare_projector_params(weight, bias,
                                               param_dtype=jnp.float32)
    out_f32 = paligemma_multimodal_projector(image_features, w_f32, b_prep32)
    out_f32 = jax.block_until_ready(out_f32)
    assert jnp.allclose(out_f32, ref, atol=1e-5, rtol=1e-5), "f32 path mismatch"

    # 3) Exercise the multi-step pipelined path (grid of 4 tiles of 8 rows).
    out_tiled = paligemma_multimodal_projector(image_features, w_f32, b_prep32,
                                               tm_max=8)
    out_tiled = jax.block_until_ready(out_tiled)
    assert jnp.allclose(out_tiled, ref, atol=1e-5, rtol=1e-5), "tiled mismatch"

    print("KERNEL_OK")
</pallas_src>

<mosaic_0001>
module attributes {stable_mosaic.version = 11 : i64} {
  func.func @_projector_kernel(%arg0: i32, %arg1: memref<32x128xbf16, #tpu.memory_space<vmem>>, %arg2: memref<128x256xbf16, #tpu.memory_space<vmem>>, %arg3: memref<1x256xf32, #tpu.memory_space<vmem>>, %arg4: memref<32x256xf32, #tpu.memory_space<vmem>>) attributes {dimension_semantics = [#tpu.dimension_semantics<parallel>], iteration_bounds = array<i64: 1>, scalar_prefetch = 0 : i64, scratch_operands = 0 : i64, tpu.core_type = #tpu.core_type<tc>, window_params = [{transform_indices = @transform_0, window_bounds = array<i64: 32, 128>}, {pipeline_mode = #tpu.pipeline_mode<synchronous>, transform_indices = @transform_1, window_bounds = array<i64: 128, 256>}, {pipeline_mode = #tpu.pipeline_mode<synchronous>, transform_indices = @transform_2, window_bounds = array<i64: 1, 256>}, {transform_indices = @transform_3, window_bounds = array<i64: 32, 256>}]} {
    %c0 = arith.constant 0 : index
    %c0_0 = arith.constant 0 : index
    %0 = vector.load %arg1[%c0, %c0_0] : memref<32x128xbf16, #tpu.memory_space<vmem>>, vector<32x128xbf16>
    %c0_1 = arith.constant 0 : index
    %c0_2 = arith.constant 0 : index
    %1 = vector.load %arg2[%c0_1, %c0_2] : memref<128x256xbf16, #tpu.memory_space<vmem>>, vector<128x256xbf16>
    %cst = arith.constant dense<0.000000e+00> : vector<32x256xf32>
    %2 = tpu.matmul %0, %1, %cst {dimension_numbers = #tpu.dot_dimension_numbers<[1], [0], [0], [1], [0, 0, 1, 1], [], []>} : vector<32x128xbf16>, vector<128x256xbf16>, vector<32x256xf32> -> vector<32x256xf32>
    %c0_3 = arith.constant 0 : index
    %c0_4 = arith.constant 0 : index
    %3 = vector.load %arg3[%c0_3, %c0_4] : memref<1x256xf32, #tpu.memory_space<vmem>>, vector<1x256xf32>
    %4 = vector.broadcast %3 : vector<1x256xf32> to vector<32x256xf32>
    %5 = arith.addf %2, %4 : vector<32x256xf32>
    %c0_5 = arith.constant 0 : index
    %c0_6 = arith.constant 0 : index
    %6 = vector.load %arg4[%c0_5, %c0_6] : memref<32x256xf32, #tpu.memory_space<vmem>>, vector<32x256xf32>
    tpu.vector_store %arg4[%c0_5, %c0_6], %5 {strides = array<i32>} : memref<32x256xf32, #tpu.memory_space<vmem>>, vector<32x256xf32>,
    return
  }
  func.func @transform_0(%arg0: i32) -> (i32, i32) {
    %c0_i32 = arith.constant 0 : i32
    %c0_i32_0 = arith.constant 0 : i32
    return %arg0, %c0_i32 : i32, i32
  }
  func.func @transform_1(%arg0: i32) -> (i32, i32) {
    %c0_i32 = arith.constant 0 : i32
    %c0_i32_0 = arith.constant 0 : i32
    %c0_i32_1 = arith.constant 0 : i32
    return %c0_i32, %c0_i32_0 : i32, i32
  }
  func.func @transform_2(%arg0: i32) -> (i32, i32) {
    %c0_i32 = arith.constant 0 : i32
    %c0_i32_0 = arith.constant 0 : i32
    %c0_i32_1 = arith.constant 0 : i32
    return %c0_i32, %c0_i32_0 : i32, i32
  }
  func.func @transform_3(%arg0: i32) -> (i32, i32) {
    %c0_i32 = arith.constant 0 : i32
    %c0_i32_0 = arith.constant 0 : i32
    return %arg0, %c0_i32 : i32, i32
  }
}

module attributes {stable_mosaic.version = 11 : i64} {
  func.func @_projector_kernel(%arg0: i32, %arg1: memref<32x128xbf16, #tpu.memory_space<vmem>>, %arg2: memref<128x256xbf16, #tpu.memory_space<vmem>>, %arg3: memref<1x256xf32, #tpu.memory_space<vmem>>, %arg4: memref<32x256xf32, #tpu.memory_space<vmem>>) attributes {dimension_semantics = [#tpu.dimension_semantics<parallel>], iteration_bounds = array<i64: 1>, scalar_prefetch = 0 : i64, scratch_operands = 0 : i64, tpu.core_type = #tpu.core_type<tc>, window_params = [{transform_indices = @transform_0, window_bounds = array<i64: 32, 128>}, {pipeline_mode = #tpu.pipeline_mode<synchronous>, transform_indices = @transform_1, window_bounds = array<i64: 128, 256>}, {pipeline_mode = #tpu.pipeline_mode<synchronous>, transform_indices = @transform_2, window_bounds = array<i64: 1, 256>}, {transform_indices = @transform_3, window_bounds = array<i64: 32, 256>}]} {
    %c0 = arith.constant 0 : index
    %c0_0 = arith.constant 0 : index
    %0 = vector.load %arg1[%c0, %c0_0] : memref<32x128xbf16, #tpu.memory_space<vmem>>, vector<32x128xbf16>
    %c0_1 = arith.constant 0 : index
    %c0_2 = arith.constant 0 : index
    %1 = vector.load %arg2[%c0_1, %c0_2] : memref<128x256xbf16, #tpu.memory_space<vmem>>, vector<128x256xbf16>
    %cst = arith.constant dense<0.000000e+00> : vector<32x256xf32>
    %2 = tpu.matmul %0, %1, %cst {dimension_numbers = #tpu.dot_dimension_numbers<[1], [0], [0], [1], [0, 0, 1, 1], [], []>} : vector<32x128xbf16>, vector<128x256xbf16>, vector<32x256xf32> -> vector<32x256xf32>
    %c0_3 = arith.constant 0 : index
    %c0_4 = arith.constant 0 : index
    %3 = vector.load %arg3[%c0_3, %c0_4] : memref<1x256xf32, #tpu.memory_space<vmem>>, vector<1x256xf32>
    %4 = vector.broadcast %3 : vector<1x256xf32> to vector<32x256xf32>
    %5 = arith.addf %2, %4 : vector<32x256xf32>
    %c0_5 = arith.constant 0 : index
    %c0_6 = arith.constant 0 : index
    %6 = vector.load %arg4[%c0_5, %c0_6] : memref<32x256xf32, #tpu.memory_space<vmem>>, vector<32x256xf32>
    tpu.vector_store %arg4[%c0_5, %c0_6], %5 {strides = array<i32>} : memref<32x256xf32, #tpu.memory_space<vmem>>, vector<32x256xf32>,
    return
  }
  func.func @transform_0(%arg0: i32) -> (i32, i32) {
    %c0_i32 = arith.constant 0 : i32
    %c0_i32_0 = arith.constant 0 : i32
    return %arg0, %c0_i32 : i32, i32
  }
  func.func @transform_1(%arg0: i32) -> (i32, i32) {
    %c0_i32 = arith.constant 0 : i32
    %c0_i32_0 = arith.constant 0 : i32
    %c0_i32_1 = arith.constant 0 : i32
    return %c0_i32, %c0_i32_0 : i32, i32
  }
  func.func @transform_2(%arg0: i32) -> (i32, i32) {
    %c0_i32 = arith.constant 0 : i32
    %c0_i32_0 = arith.constant 0 : i32
    %c0_i32_1 = arith.constant 0 : i32
    return %c0_i32, %c0_i32_0 : i32, i32
  }
  func.func @transform_3(%arg0: i32) -> (i32, i32) {
    %c0_i32 = arith.constant 0 : i32
    %c0_i32_0 = arith.constant 0 : i32
    return %arg0, %c0_i32 : i32, i32
  }
}

</mosaic_0001>

<llo_original>
// kernel: tpu_custom_call.1
$region0: #{tpu_custom_call.1}
  #allocation0 [shape = 'u32[]', space=smem, size = 0x4, offset = 0x4, fixed_abs, tag = 'smem constant byte address 0x4 - core index']
  #allocation1 [shape = 'u32[144,128]{1,0:T(1,128)}', space=vmem, size = 0x12000, scoped, tag = 'internal scratch']
  %s0 = inlined_call_operand.hbm [shape: bf16[32,128], index: 0, kind: input, shape index: {}]
  %s1 = inlined_call_operand.hbm [shape: bf16[128,256], index: 1, kind: input, shape index: {}]
  %s2 = inlined_call_operand.vmem [shape: f32[1,256], index: 2, kind: input, shape index: {}]
  %s3 = inlined_call_operand.hbm [shape: f32[32,256], index: 3, kind: output, shape index: {}]
  %s4 = sld [smem:[#allocation0]]
  $region30: #{tpu_custom_call.1} parent=0
    _
  %s6 = ssub.s32 1, %s4
  %s7 = scalar_select 0, %s6, %s4
  $region1: #{tpu_custom_call.1} parent=0
    #allocation2 [shape = 'u8[8192]{0}', space=vmem, size = 0x2000, scoped, tag = 'input window, operand 0, single buffered']
    #allocation3 [shape = 's32[1]{0}', space=sflag, size = 0x4, scoped, tag = 'scoped memory for tpu_custom_call.1']
    #allocation4 [shape = 's32[1]{0}', space=sflag, size = 0x4, scoped, tag = 'scoped memory for tpu_custom_call.1']
    #allocation5 [shape = 'u8[65536]{0}', space=vmem, size = 0x10000, scoped, tag = 'input window, operand 1, single buffered']
    #allocation6 [shape = 's32[1]{0}', space=sflag, size = 0x4, scoped, tag = 'scoped memory for tpu_custom_call.1']
    #allocation7 [shape = 'u8[32768]{0}', space=vmem, size = 0x8000, scoped, tag = 'output window, operand 0, single buffered']
    %8 = vsyncpa [#allocation3], 0
    %9 = vsyncpa [#allocation6], 0
    %10 = vsyncpa [#allocation4], 0
    // Predicated region
    $region2: #{tpu_custom_call.1} parent=1 // pred_check
      _
    $region3: #{tpu_custom_call.1} parent=1 // pred_check_branch
      %12 = sbr.rel (0) target = $region5
    $region4: #{tpu_custom_call.1} parent=1 // pred_region
      %s14 = ssub.s32 256, 256
      %15 = vsyncadd [#allocation3], %s14
      %s16 = sshll.u32 [#allocation2], 4
      %s17 = int_to_ptr.vmem [resolvable:$true] %s16
      %22 = dma.hbm_to_vmem [thread:$0]  %s0, 256, %s17, [#allocation3], 64, 64, 4
    $region5: #{tpu_custom_call.1} parent=1 // pred_fallthru
      _
    // Predicated region
    $region6: #{tpu_custom_call.1} parent=1 // pred_check
      _
    $region7: #{tpu_custom_call.1} parent=1 // pred_check_branch
      %24 = sbr.rel (0) target = $region9
    $region8: #{tpu_custom_call.1} parent=1 // pred_region
      %s26 = ssub.s32 2048, 2048
      %27 = vsyncadd [#allocation6], %s26
      %s28 = sshll.u32 [#allocation5], 4
      %s29 = int_to_ptr.vmem [resolvable:$true] %s28
      %34 = dma.hbm_to_vmem [thread:$0]  %s1, 2048, %s29, [#allocation6], 128, 128, 8
    $region9: #{tpu_custom_call.1} parent=1 // pred_fallthru
      _
    // Predicated region
    $region10: #{tpu_custom_call.1} parent=1 // pred_check
      _
    $region11: #{tpu_custom_call.1} parent=1 // pred_check_branch
      %36 = sbr.rel (0) target = $region13
    $region12: #{tpu_custom_call.1} parent=1 // pred_region
      _
    $region13: #{tpu_custom_call.1} parent=1 // pred_fallthru
      _
    // Predicated region
    $region14: #{tpu_custom_call.1} parent=1 // pred_check
      _
    $region15: #{tpu_custom_call.1} parent=1 // pred_check_branch
      %38 = sbr.rel (0) target = $region17
    $region16: #{tpu_custom_call.1} parent=1 // pred_region
      %39 = dma.done [#allocation3], 256
    $region17: #{tpu_custom_call.1} parent=1 // pred_fallthru
      _
    // Predicated region
    $region18: #{tpu_custom_call.1} parent=1 // pred_check
      _
    $region19: #{tpu_custom_call.1} parent=1 // pred_check_branch
      %41 = sbr.rel (0) target = $region21
    $region20: #{tpu_custom_call.1} parent=1 // pred_region
      %42 = dma.done [#allocation6], 2048
    $region21: #{tpu_custom_call.1} parent=1 // pred_fallthru
      _
    %v44 = vld [vmem:[#allocation2] sm:$0xf]
    %v45 = vld [vmem:[#allocation2 + $0x4] sm:$0xf]
    %v46 = vld [vmem:[#allocation2 + $0x8] sm:$0xf]
    %v47 = vld [vmem:[#allocation2 + $0xc] sm:$0xf]
    %v48 = vld [vmem:[#allocation5] sm:$0xff]
    %v49 = vld [vmem:[#allocation5 + $0x8] sm:$0xff]
    %v50 = vld [vmem:[#allocation5 + $0x10] sm:$0xff]
    %v51 = vld [vmem:[#allocation5 + $0x18] sm:$0xff]
    %v52 = vld [vmem:[#allocation5 + $0x20] sm:$0xff]
    %v53 = vld [vmem:[#allocation5 + $0x28] sm:$0xff]
    %v54 = vld [vmem:[#allocation5 + $0x30] sm:$0xff]
    %v55 = vld [vmem:[#allocation5 + $0x38] sm:$0xff]
    %v56 = vld [vmem:[#allocation5 + $0x40] sm:$0xff]
    %v57 = vld [vmem:[#allocation5 + $0x48] sm:$0xff]
    %v58 = vld [vmem:[#allocation5 + $0x50] sm:$0xff]
    %v59 = vld [vmem:[#allocation5 + $0x58] sm:$0xff]
    %v60 = vld [vmem:[#allocation5 + $0x60] sm:$0xff]
    %v61 = vld [vmem:[#allocation5 + $0x68] sm:$0xff]
    %v62 = vld [vmem:[#allocation5 + $0x70] sm:$0xff]
    %v63 = vld [vmem:[#allocation5 + $0x78] sm:$0xff]
    %v64 = vld [vmem:[%s2] sm:$0x3]
    %v66 = vlaneseq
    %v67 = vshrl.u32 %v66, 7
    %v68 = vsub.s32 0, %v67
    %v69 = vrot.slane %v64, %v68
    %v70 = vlaneseq
    %v71 = vshrl.u32 %v70, 7
    %v72 = vsub.s32 1, %v71
    %v73 = vrot.slane %v64, %v72
    %v80 = vunpack.c.l.b16 %v44
    %v81 = vunpack.c.l.b16 %v45
    %v82 = vunpack.c.l.b16 %v46
    %v83 = vunpack.c.l.b16 %v47
    %v84 = vpack.c.b16 %v81, %v80
    %v85 = vpack.c.b16 %v83, %v82
    %v104 = vunpack.c.l.b16 %v48
    %v105 = vunpack.c.h.b16 %v48
    %v106 = vunpack.c.l.b16 %v49
    %v107 = vunpack.c.h.b16 %v49
    %v108 = vunpack.c.l.b16 %v50
    %v109 = vunpack.c.h.b16 %v50
    %v110 = vunpack.c.l.b16 %v51
    %v111 = vunpack.c.h.b16 %v51
    %v112 = vunpack.c.l.b16 %v52
    %v113 = vunpack.c.h.b16 %v52
    %v114 = vunpack.c.l.b16 %v53
    %v115 = vunpack.c.h.b16 %v53
    %v116 = vunpack.c.l.b16 %v54
    %v117 = vunpack.c.h.b16 %v54
    %v118 = vunpack.c.l.b16 %v55
    %v119 = vunpack.c.h.b16 %v55
    %v120 = vunpack.c.l.b16 %v56
    %v121 = vunpack.c.h.b16 %v56
    %v122 = vunpack.c.l.b16 %v57
    %v123 = vunpack.c.h.b16 %v57
    %v124 = vunpack.c.l.b16 %v58
    %v125 = vunpack.c.h.b16 %v58
    %v126 = vunpack.c.l.b16 %v59
    %v127 = vunpack.c.h.b16 %v59
    %v128 = vunpack.c.l.b16 %v60
    %v129 = vunpack.c.h.b16 %v60
    %v130 = vunpack.c.l.b16 %v61
    %v131 = vunpack.c.h.b16 %v61
    %v132 = vunpack.c.l.b16 %v62
    %v133 = vunpack.c.h.b16 %v62
    %v134 = vunpack.c.l.b16 %v63
    %v135 = vunpack.c.h.b16 %v63
    %v136 = vpack.c.b16 %v106, %v104
    %v137 = vpack.c.b16 %v107, %v105
    %v138 = vpack.c.b16 %v110, %v108
    %v139 = vpack.c.b16 %v111, %v109
    %v140 = vpack.c.b16 %v114, %v112
    %v141 = vpack.c.b16 %v115, %v113
    %v142 = vpack.c.b16 %v118, %v116
    %v143 = vpack.c.b16 %v119, %v117
    %v144 = vpack.c.b16 %v122, %v120
    %v145 = vpack.c.b16 %v123, %v121
    %v146 = vpack.c.b16 %v126, %v124
    %v147 = vpack.c.b16 %v127, %v125
    %v148 = vpack.c.b16 %v130, %v128
    %v149 = vpack.c.b16 %v131, %v129
    %v150 = vpack.c.b16 %v134, %v132
    %v151 = vpack.c.b16 %v135, %v133
    %168 = vmatprep.subr.bf16.mxu0 %v151
    %169 = vmatpush1.bf16.msra.mxu0 %v150
    %170 = vmatprep.subr.bf16.mxu0 %v149
    %171 = vmatpush1.bf16.msra.mxu0 %v148
    %172 = vmatprep.subr.bf16.mxu0 %v147
    %173 = vmatpush1.bf16.msra.mxu0 %v146
    %174 = vmatprep.subr.bf16.mxu0 %v145
    %175 = vmatpush1.bf16.msra.mxu0 %v144
    %176 = vmatprep.subr.bf16.mxu0 %v143
    %177 = vmatpush1.bf16.msra.mxu0 %v142
    %178 = vmatprep.subr.bf16.mxu0 %v141
    %179 = vmatpush1.bf16.msra.mxu0 %v140
    %180 = vmatprep.subr.bf16.mxu0 %v139
    %181 = vmatpush1.bf16.msra.mxu0 %v138
    %182 = vmatprep.subr.bf16.mxu0 %v137
    %183 = vmatpush1.bf16.msra.mxu0 %v136
    %184 = vmatprep.subr.bf16.mxu0 0
    %185 = vmatpush2.bf16.msra.mxu0 0
    %186 = vmatprep.subr.bf16.mxu0 0
    %187 = vmatpush2.bf16.msra.mxu0 0
    %188 = vmatprep.subr.bf16.mxu0 0
    %189 = vmatpush2.bf16.msra.mxu0 0
    %190 = vmatprep.subr.bf16.mxu0 0
    %191 = vmatpush2.bf16.msra.mxu0 0
    %192 = vmatprep.subr.bf16.mxu0 0
    %193 = vmatpush2.bf16.msra.mxu0 0
    %194 = vmatprep.subr.bf16.mxu0 0
    %195 = vmatpush2.bf16.msra.mxu0 0
    %196 = vmatprep.subr.bf16.mxu0 0
    %197 = vmatpush2.bf16.msra.mxu0 0
    %198 = vmatprep.subr.bf16.mxu0 0
    %199 = vmatpush2.bf16.msra.mxu0 0
    %200 = vmatprep.mubr.bf16.mxu0 0
    %201 = vmatmul.mubr.bf16.gmra.mxu0 %v84
    %v202 = vpop.f32.mrf.mxu0
    %v203 = vadd.f32 %v69, %v202
    %v204 = vpop.f32.mrf.mxu0
    %v205 = vadd.f32 %v73, %v204
    %v206 = vpop.f32.mrf.mxu0
    %v207 = vadd.f32 %v69, %v206
    %v208 = vpop.f32.mrf.mxu0
    %v209 = vadd.f32 %v73, %v208
    %210 = vmatprep.mubr.bf16.mxu0 0
    %211 = vmatmul.mubr.bf16.gmra.mxu0 %v85
    %v212 = vpop.f32.mrf.mxu0
    %v213 = vadd.f32 %v69, %v212
    %v214 = vpop.f32.mrf.mxu0
    %v215 = vadd.f32 %v73, %v214
    %v216 = vpop.f32.mrf.mxu0
    %v217 = vadd.f32 %v69, %v216
    %v218 = vpop.f32.mrf.mxu0
    %v219 = vadd.f32 %v73, %v218
    %220 = vdwg.mxu0
    %221 = vst [vmem:[#allocation7] sm:$0xff] %v203
    %222 = vst [vmem:[#allocation7 + $0x8] sm:$0xff] %v205
    %223 = vst [vmem:[#allocation7 + $0x10] sm:$0xff] %v207
    %224 = vst [vmem:[#allocation7 + $0x18] sm:$0xff] %v209
    %225 = vst [vmem:[#allocation7 + $0x20] sm:$0xff] %v213
    %226 = vst [vmem:[#allocation7 + $0x28] sm:$0xff] %v215
    %227 = vst [vmem:[#allocation7 + $0x30] sm:$0xff] %v217
    %228 = vst [vmem:[#allocation7 + $0x38] sm:$0xff] %v219
    // Predicated region
    $region22: #{tpu_custom_call.1} parent=1 // pred_check
      _
    $region23: #{tpu_custom_call.1} parent=1 // pred_check_branch
      %230 = sbr.rel (0) target = $region25
    $region24: #{tpu_custom_call.1} parent=1 // pred_region
      %s232 = ssub.s32 1024, 1024
      %233 = vsyncadd [#allocation4], %s232
      %s234 = sshll.u32 [#allocation7], 4
      %s235 = int_to_ptr.vmem [resolvable:$true] %s234
      %240 = dma.vmem_to_hbm [thread:$0]  %s235, 1024, %s3, [#allocation4], 256, 256, 16
    $region25: #{tpu_custom_call.1} parent=1 // pred_fallthru
      _
    // Predicated region
    $region26: #{tpu_custom_call.1} parent=1 // pred_check
      _
    $region27: #{tpu_custom_call.1} parent=1 // pred_check_branch
      %242 = sbr.rel (0) target = $region29
    $region28: #{tpu_custom_call.1} parent=1 // pred_region
      %243 = dma.done [#allocation4], 1024
    $region29: #{tpu_custom_call.1} parent=1 // pred_fallthru
      _
    %244 = vsyncpa [#allocation3], 1
    %245 = vsyncpa [#allocation6], 1
    %246 = vsyncpa [#allocation4], 1

// kernel: tpu_custom_call.1
$region0: #{tpu_custom_call.1}
  #allocation0 [shape = 'u32[]', space=smem, size = 0x4, offset = 0x4, fixed_abs, tag = 'smem constant byte address 0x4 - core index']
  #allocation1 [shape = 'u32[144,128]{1,0:T(1,128)}', space=vmem, size = 0x12000, scoped, tag = 'internal scratch']
  %s0 = inlined_call_operand.hbm [shape: bf16[32,128], index: 0, kind: input, shape index: {}]
  %s1 = inlined_call_operand.hbm [shape: bf16[128,256], index: 1, kind: input, shape index: {}]
  %s2 = inlined_call_operand.vmem [shape: f32[1,256], index: 2, kind: input, shape index: {}]
  %s3 = inlined_call_operand.hbm [shape: f32[32,256], index: 3, kind: output, shape index: {}]
  %s4 = sld [smem:[#allocation0]]
  $region30: #{tpu_custom_call.1} parent=0
    _
  %s6 = ssub.s32 1, %s4
  %s7 = scalar_select 0, %s6, %s4
  $region1: #{tpu_custom_call.1} parent=0
    #allocation2 [shape = 'u8[8192]{0}', space=vmem, size = 0x2000, scoped, tag = 'input window, operand 0, single buffered']
    #allocation3 [shape = 's32[1]{0}', space=sflag, size = 0x4, scoped, tag = 'scoped memory for tpu_custom_call.1']
    #allocation4 [shape = 's32[1]{0}', space=sflag, size = 0x4, scoped, tag = 'scoped memory for tpu_custom_call.1']
    #allocation5 [shape = 'u8[65536]{0}', space=vmem, size = 0x10000, scoped, tag = 'input window, operand 1, single buffered']
    #allocation6 [shape = 's32[1]{0}', space=sflag, size = 0x4, scoped, tag = 'scoped memory for tpu_custom_call.1']
    #allocation7 [shape = 'u8[32768]{0}', space=vmem, size = 0x8000, scoped, tag = 'output window, operand 0, single buffered']
    %8 = vsyncpa [#allocation3], 0
    %9 = vsyncpa [#allocation6], 0
    %10 = vsyncpa [#allocation4], 0
    // Predicated region
    $region2: #{tpu_custom_call.1} parent=1 // pred_check
      _
    $region3: #{tpu_custom_call.1} parent=1 // pred_check_branch
      %12 = sbr.rel (0) target = $region5
    $region4: #{tpu_custom_call.1} parent=1 // pred_region
      %s14 = ssub.s32 256, 256
      %15 = vsyncadd [#allocation3], %s14
      %s16 = sshll.u32 [#allocation2], 4
      %s17 = int_to_ptr.vmem [resolvable:$true] %s16
      %22 = dma.hbm_to_vmem [thread:$0]  %s0, 256, %s17, [#allocation3], 64, 64, 4
    $region5: #{tpu_custom_call.1} parent=1 // pred_fallthru
      _
    // Predicated region
    $region6: #{tpu_custom_call.1} parent=1 // pred_check
      _
    $region7: #{tpu_custom_call.1} parent=1 // pred_check_branch
      %24 = sbr.rel (0) target = $region9
    $region8: #{tpu_custom_call.1} parent=1 // pred_region
      %s26 = ssub.s32 2048, 2048
      %27 = vsyncadd [#allocation6], %s26
      %s28 = sshll.u32 [#allocation5], 4
      %s29 = int_to_ptr.vmem [resolvable:$true] %s28
      %34 = dma.hbm_to_vmem [thread:$0]  %s1, 2048, %s29, [#allocation6], 128, 128, 8
    $region9: #{tpu_custom_call.1} parent=1 // pred_fallthru
      _
    // Predicated region
    $region10: #{tpu_custom_call.1} parent=1 // pred_check
      _
    $region11: #{tpu_custom_call.1} parent=1 // pred_check_branch
      %36 = sbr.rel (0) target = $region13
    $region12: #{tpu_custom_call.1} parent=1 // pred_region
      _
    $region13: #{tpu_custom_call.1} parent=1 // pred_fallthru
      _
    // Predicated region
    $region14: #{tpu_custom_call.1} parent=1 // pred_check
      _
    $region15: #{tpu_custom_call.1} parent=1 // pred_check_branch
      %38 = sbr.rel (0) target = $region17
    $region16: #{tpu_custom_call.1} parent=1 // pred_region
      %39 = dma.done [#allocation3], 256
    $region17: #{tpu_custom_call.1} parent=1 // pred_fallthru
      _
    // Predicated region
    $region18: #{tpu_custom_call.1} parent=1 // pred_check
      _
    $region19: #{tpu_custom_call.1} parent=1 // pred_check_branch
      %41 = sbr.rel (0) target = $region21
    $region20: #{tpu_custom_call.1} parent=1 // pred_region
      %42 = dma.done [#allocation6], 2048
    $region21: #{tpu_custom_call.1} parent=1 // pred_fallthru
      _
    %v44 = vld [vmem:[#allocation2] sm:$0xf]
    %v45 = vld [vmem:[#allocation2 + $0x4] sm:$0xf]
    %v46 = vld [vmem:[#allocation2 + $0x8] sm:$0xf]
    %v47 = vld [vmem:[#allocation2 + $0xc] sm:$0xf]
    %v48 = vld [vmem:[#allocation5] sm:$0xff]
    %v49 = vld [vmem:[#allocation5 + $0x8] sm:$0xff]
    %v50 = vld [vmem:[#allocation5 + $0x10] sm:$0xff]
    %v51 = vld [vmem:[#allocation5 + $0x18] sm:$0xff]
    %v52 = vld [vmem:[#allocation5 + $0x20] sm:$0xff]
    %v53 = vld [vmem:[#allocation5 + $0x28] sm:$0xff]
    %v54 = vld [vmem:[#allocation5 + $0x30] sm:$0xff]
    %v55 = vld [vmem:[#allocation5 + $0x38] sm:$0xff]
    %v56 = vld [vmem:[#allocation5 + $0x40] sm:$0xff]
    %v57 = vld [vmem:[#allocation5 + $0x48] sm:$0xff]
    %v58 = vld [vmem:[#allocation5 + $0x50] sm:$0xff]
    %v59 = vld [vmem:[#allocation5 + $0x58] sm:$0xff]
    %v60 = vld [vmem:[#allocation5 + $0x60] sm:$0xff]
    %v61 = vld [vmem:[#allocation5 + $0x68] sm:$0xff]
    %v62 = vld [vmem:[#allocation5 + $0x70] sm:$0xff]
    %v63 = vld [vmem:[#allocation5 + $0x78] sm:$0xff]
    %v64 = vld [vmem:[%s2] sm:$0x3]
    %v66 = vlaneseq
    %v67 = vshrl.u32 %v66, 7
    %v68 = vsub.s32 0, %v67
    %v69 = vrot.slane %v64, %v68
    %v70 = vlaneseq
    %v71 = vshrl.u32 %v70, 7
    %v72 = vsub.s32 1, %v71
    %v73 = vrot.slane %v64, %v72
    %v80 = vunpack.c.l.b16 %v44
    %v81 = vunpack.c.l.b16 %v45
    %v82 = vunpack.c.l.b16 %v46
    %v83 = vunpack.c.l.b16 %v47
    %v84 = vpack.c.b16 %v81, %v80
    %v85 = vpack.c.b16 %v83, %v82
    %v104 = vunpack.c.l.b16 %v48
    %v105 = vunpack.c.h.b16 %v48
    %v106 = vunpack.c.l.b16 %v49
    %v107 = vunpack.c.h.b16 %v49
    %v108 = vunpack.c.l.b16 %v50
    %v109 = vunpack.c.h.b16 %v50
    %v110 = vunpack.c.l.b16 %v51
    %v111 = vunpack.c.h.b16 %v51
    %v112 = vunpack.c.l.b16 %v52
    %v113 = vunpack.c.h.b16 %v52
    %v114 = vunpack.c.l.b16 %v53
    %v115 = vunpack.c.h.b16 %v53
    %v116 = vunpack.c.l.b16 %v54
    %v117 = vunpack.c.h.b16 %v54
    %v118 = vunpack.c.l.b16 %v55
    %v119 = vunpack.c.h.b16 %v55
    %v120 = vunpack.c.l.b16 %v56
    %v121 = vunpack.c.h.b16 %v56
    %v122 = vunpack.c.l.b16 %v57
    %v123 = vunpack.c.h.b16 %v57
    %v124 = vunpack.c.l.b16 %v58
    %v125 = vunpack.c.h.b16 %v58
    %v126 = vunpack.c.l.b16 %v59
    %v127 = vunpack.c.h.b16 %v59
    %v128 = vunpack.c.l.b16 %v60
    %v129 = vunpack.c.h.b16 %v60
    %v130 = vunpack.c.l.b16 %v61
    %v131 = vunpack.c.h.b16 %v61
    %v132 = vunpack.c.l.b16 %v62
    %v133 = vunpack.c.h.b16 %v62
    %v134 = vunpack.c.l.b16 %v63
    %v135 = vunpack.c.h.b16 %v63
    %v136 = vpack.c.b16 %v106, %v104
    %v137 = vpack.c.b16 %v107, %v105
    %v138 = vpack.c.b16 %v110, %v108
    %v139 = vpack.c.b16 %v111, %v109
    %v140 = vpack.c.b16 %v114, %v112
    %v141 = vpack.c.b16 %v115, %v113
    %v142 = vpack.c.b16 %v118, %v116
    %v143 = vpack.c.b16 %v119, %v117
    %v144 = vpack.c.b16 %v122, %v120
    %v145 = vpack.c.b16 %v123, %v121
    %v146 = vpack.c.b16 %v126, %v124
    %v147 = vpack.c.b16 %v127, %v125
    %v148 = vpack.c.b16 %v130, %v128
    %v149 = vpack.c.b16 %v131, %v129
    %v150 = vpack.c.b16 %v134, %v132
    %v151 = vpack.c.b16 %v135, %v133
    %168 = vmatprep.subr.bf16.mxu0 %v151
    %169 = vmatpush1.bf16.msra.mxu0 %v150
    %170 = vmatprep.subr.bf16.mxu0 %v149
    %171 = vmatpush1.bf16.msra.mxu0 %v148
    %172 = vmatprep.subr.bf16.mxu0 %v147
    %173 = vmatpush1.bf16.msra.mxu0 %v146
    %174 = vmatprep.subr.bf16.mxu0 %v145
    %175 = vmatpush1.bf16.msra.mxu0 %v144
    %176 = vmatprep.subr.bf16.mxu0 %v143
    %177 = vmatpush1.bf16.msra.mxu0 %v142
    %178 = vmatprep.subr.bf16.mxu0 %v141
    %179 = vmatpush1.bf16.msra.mxu0 %v140
    %180 = vmatprep.subr.bf16.mxu0 %v139
    %181 = vmatpush1.bf16.msra.mxu0 %v138
    %182 = vmatprep.subr.bf16.mxu0 %v137
    %183 = vmatpush1.bf16.msra.mxu0 %v136
    %184 = vmatprep.subr.bf16.mxu0 0
    %185 = vmatpush2.bf16.msra.mxu0 0
    %186 = vmatprep.subr.bf16.mxu0 0
    %187 = vmatpush2.bf16.msra.mxu0 0
    %188 = vmatprep.subr.bf16.mxu0 0
    %189 = vmatpush2.bf16.msra.mxu0 0
    %190 = vmatprep.subr.bf16.mxu0 0
    %191 = vmatpush2.bf16.msra.mxu0 0
    %192 = vmatprep.subr.bf16.mxu0 0
    %193 = vmatpush2.bf16.msra.mxu0 0
    %194 = vmatprep.subr.bf16.mxu0 0
    %195 = vmatpush2.bf16.msra.mxu0 0
    %196 = vmatprep.subr.bf16.mxu0 0
    %197 = vmatpush2.bf16.msra.mxu0 0
    %198 = vmatprep.subr.bf16.mxu0 0
    %199 = vmatpush2.bf16.msra.mxu0 0
    %200 = vmatprep.mubr.bf16.mxu0 0
    %201 = vmatmul.mubr.bf16.gmra.mxu0 %v84
    %v202 = vpop.f32.mrf.mxu0
    %v203 = vadd.f32 %v69, %v202
    %v204 = vpop.f32.mrf.mxu0
    %v205 = vadd.f32 %v73, %v204
    %v206 = vpop.f32.mrf.mxu0
    %v207 = vadd.f32 %v69, %v206
    %v208 = vpop.f32.mrf.mxu0
    %v209 = vadd.f32 %v73, %v208
    %210 = vmatprep.mubr.bf16.mxu0 0
    %211 = vmatmul.mubr.bf16.gmra.mxu0 %v85
    %v212 = vpop.f32.mrf.mxu0
    %v213 = vadd.f32 %v69, %v212
    %v214 = vpop.f32.mrf.mxu0
    %v215 = vadd.f32 %v73, %v214
    %v216 = vpop.f32.mrf.mxu0
    %v217 = vadd.f32 %v69, %v216
    %v218 = vpop.f32.mrf.mxu0
    %v219 = vadd.f32 %v73, %v218
    %220 = vdwg.mxu0
    %221 = vst [vmem:[#allocation7] sm:$0xff] %v203
    %222 = vst [vmem:[#allocation7 + $0x8] sm:$0xff] %v205
    %223 = vst [vmem:[#allocation7 + $0x10] sm:$0xff] %v207
    %224 = vst [vmem:[#allocation7 + $0x18] sm:$0xff] %v209
    %225 = vst [vmem:[#allocation7 + $0x20] sm:$0xff] %v213
    %226 = vst [vmem:[#allocation7 + $0x28] sm:$0xff] %v215
    %227 = vst [vmem:[#allocation7 + $0x30] sm:$0xff] %v217
    %228 = vst [vmem:[#allocation7 + $0x38] sm:$0xff] %v219
    // Predicated region
    $region22: #{tpu_custom_call.1} parent=1 // pred_check
      _
    $region23: #{tpu_custom_call.1} parent=1 // pred_check_branch
      %230 = sbr.rel (0) target = $region25
    $region24: #{tpu_custom_call.1} parent=1 // pred_region
      %s232 = ssub.s32 1024, 1024
      %233 = vsyncadd [#allocation4], %s232
      %s234 = sshll.u32 [#allocation7], 4
      %s235 = int_to_ptr.vmem [resolvable:$true] %s234
      %240 = dma.vmem_to_hbm [thread:$0]  %s235, 1024, %s3, [#allocation4], 256, 256, 16
    $region25: #{tpu_custom_call.1} parent=1 // pred_fallthru
      _
    // Predicated region
    $region26: #{tpu_custom_call.1} parent=1 // pred_check
      _
    $region27: #{tpu_custom_call.1} parent=1 // pred_check_branch
      %242 = sbr.rel (0) target = $region29
    $region28: #{tpu_custom_call.1} parent=1 // pred_region
      %243 = dma.done [#allocation4], 1024
    $region29: #{tpu_custom_call.1} parent=1 // pred_fallthru
      _
    %244 = vsyncpa [#allocation3], 1
    %245 = vsyncpa [#allocation6], 1
    %246 = vsyncpa [#allocation4], 1

</llo_original>
